<compile_context>
chip_gen: v6e
topology: v6e:2x2x1
jax: 0.10.0
libtpu: 0.0.40
codegen_flags: <defaults>
</compile_context>

<pallas_src>
import jax
import jax.numpy as jnp
from jax.experimental import pallas as pl
from jax.experimental.pallas import tpu as pltpu

EPS = 1e-6


def _round_up(x, m):
    return -(-x // m) * m


def _vmem_limit_bytes():
    # Generation-dependent scoped-VMEM limit: ~100 MiB on 128-MiB parts
    # (v5e/v6e), 48 MiB on 64-MiB parts (v7x) or when the query fails.
    try:
        cap = getattr(pltpu.get_tpu_info(), "vmem_capacity_bytes", None)
    except Exception:
        cap = None
    if cap is not None and cap > 96 * 1024 * 1024:
        return 100 * 1024 * 1024
    return 48 * 1024 * 1024


VMEM_LIMIT = _vmem_limit_bytes()


def _params(n_grid_dims):
    return pltpu.CompilerParams(
        dimension_semantics=("parallel",) * n_grid_dims,
        vmem_limit_bytes=VMEM_LIMIT)


def _pick_tile(total, target=512):
    """Largest divisor of `total` that is a multiple of 8 and <= target."""
    best = 8
    for d in range(8, min(total, target) + 1, 8):
        if total % d == 0:
            best = d
    return best


# ----------------------------------------------------------------------------
# pltpu.roll sign-convention probe (cached)
# ----------------------------------------------------------------------------
_ROLL_SIGN = None


def _roll_sign():
    """Empirically determine pltpu.roll's shift sign (vs jnp.roll) once."""
    global _ROLL_SIGN
    if _ROLL_SIGN is not None:
        return _ROLL_SIGN
    x = jnp.arange(8 * 128, dtype=jnp.float32).reshape(8, 128)

    def k(x_ref, o_ref):
        o_ref[...] = pltpu.roll(x_ref[...], 1, 0)

    y = pl.pallas_call(k, out_shape=jax.ShapeDtypeStruct((8, 128), jnp.float32))(x)
    if bool(jnp.array_equal(y, jnp.roll(x, 1, 0))):
        _ROLL_SIGN = 1
    elif bool(jnp.array_equal(y, jnp.roll(x, -1, 0))):
        _ROLL_SIGN = -1
    else:
        raise RuntimeError("unexpected pltpu.roll semantics")
    return _ROLL_SIGN


# ----------------------------------------------------------------------------
# In-kernel helpers
# ----------------------------------------------------------------------------
def _erf(x):
    # Abramowitz & Stegun 7.1.26 (max abs err ~1.5e-7); divide on the EUP.
    a1, a2, a3, a4, a5 = 0.254829592, -0.284496736, 1.421413741, -1.453152027, 1.061405429
    p = 0.3275911
    s = jnp.sign(x)
    ax = jnp.abs(x)
    t = pl.reciprocal(1.0 + p * ax, approx=True)       # EUP slot (VALU relief)
    poly = ((((a5 * t + a4) * t + a3) * t + a2) * t + a1) * t
    return s * (1.0 - poly * jnp.exp(-ax * ax))


def _gelu(x):
    # PyTorch nn.GELU() default ("exact" erf formulation).
    return 0.5 * x * (1.0 + _erf(x * 0.7071067811865476))


def _ln(x, g, b):
    # LayerNorm over the last dim, biased variance, eps=1e-6, f32 statistics.
    mu = jnp.mean(x, axis=-1, keepdims=True)
    var = jnp.mean(jnp.square(x - mu), axis=-1, keepdims=True)
    return (x - mu) * jax.lax.rsqrt(var + EPS) * g + b


# ----------------------------------------------------------------------------
# Generic row-tiled matmul / LN kernels (stem, downsample, head)
# ----------------------------------------------------------------------------
def _matmul_ln_kernel(x_ref, w_ref, b_ref, g_ref, bt_ref, o_ref):
    # Stem: (patch @ W + b) then LayerNorm2d over the output channels.
    x = x_ref[...].astype(jnp.bfloat16)
    y = jnp.dot(x, w_ref[...], preferred_element_type=jnp.float32) + b_ref[...]
    o_ref[...] = _ln(y, g_ref[...], bt_ref[...])


def _ln_matmul_kernel(x_ref, g_ref, bt_ref, w_ref, b_ref, o_ref):
    # Classifier: LayerNorm2d then Linear (output padded to 128 lanes).
    y = _ln(x_ref[...], g_ref[...], bt_ref[...]).astype(jnp.bfloat16)
    o_ref[...] = jnp.dot(y, w_ref[...], preferred_element_type=jnp.float32) + b_ref[...]


def _ds_ln_matmul_kernel(x_ref, g_ref, bt_ref, w_ref, b_ref, o_ref):
    # Downsample: per-patch-segment LayerNorm (== LayerNorm applied before the
    # 2x2 gather) fused with the patch matmul.  Segment order is (kh, kw, c).
    C = g_ref.shape[-1]
    acc = jnp.zeros((x_ref.shape[0], w_ref.shape[-1]), jnp.float32)
    for s in range(4):
        seg = _ln(x_ref[:, s * C:(s + 1) * C], g_ref[...], bt_ref[...])
        acc = acc + jnp.dot(seg.astype(jnp.bfloat16), w_ref[s * C:(s + 1) * C, :],
                            preferred_element_type=jnp.float32)
    o_ref[...] = acc + b_ref[...]


def _mm_cost(M, K, N):
    return pl.CostEstimate(flops=int(2 * M * K * N), transcendentals=0,
                           bytes_accessed=int(4 * M * K + 2 * K * N + 4 * M * N + 4 * N))


def _row_tiled(kernel, x2d, consts, n_out, *, target=512, cost=None):
    """Grid over row tiles of x2d; consts (weights/LN params) stay resident."""
    M, K = x2d.shape
    if M <= target or M % 8 != 0:
        tm = M                                   # full-extent block (always legal)
    else:
        tm = _pick_tile(M, target)               # exact divisor -> no ragged tiles
    grid = (pl.cdiv(M, tm),)
    in_specs = [pl.BlockSpec((tm, K), lambda i: (i, 0))]
    in_specs += [pl.BlockSpec(c.shape, (lambda nd: (lambda i: (0,) * nd))(c.ndim))
                 for c in consts]
    return pl.pallas_call(
        kernel,
        out_shape=jax.ShapeDtypeStruct((M, n_out), jnp.float32),
        grid=grid,
        in_specs=in_specs,
        out_specs=pl.BlockSpec((tm, n_out), lambda i: (i, 0)),
        compiler_params=_params(1),
        cost_estimate=cost,
    )(x2d, *consts)


def matmul_bias_ln(x2d, w, b, g, bt, *, target=512):
    M, K = x2d.shape
    n = w.shape[1]
    return _row_tiled(_matmul_ln_kernel, x2d, [w, b, g, bt], n, target=target,
                      cost=_mm_cost(M, K, n))


def ds_ln_matmul(x2d, g, bt, w, b, *, target=512):
    M, K = x2d.shape
    n = w.shape[1]
    return _row_tiled(_ds_ln_matmul_kernel, x2d, [g, bt, w, b], n, target=target,
                      cost=_mm_cost(M, K, n))


def ln_matmul_bias(x2d, g, bt, w, b, *, target=512):
    M, K = x2d.shape
    n = w.shape[1]
    return _row_tiled(_ln_matmul_kernel, x2d, [g, bt, w, b], n, target=target,
                      cost=_mm_cost(M, K, n))


# ----------------------------------------------------------------------------
# CNBlock kernels (zero-padded flat layout)
# ----------------------------------------------------------------------------
def _make_dwconv_kernel(Wp, HWpad):
    """Depthwise 7x7 conv on a zero-padded flat (HWpad, C) image: tap (di,dj)
    is a static sublane rotation by (di-3)*Wp + (dj-3); pad pixels hold real
    zeros so no masks are needed.  Wrapped reads only land on pad rows."""
    sgn = _roll_sign()
    taps = []
    for di in range(7):
        for dj in range(7):
            s = (di - 3) * Wp + (dj - 3)
            taps.append(((-s * sgn) % HWpad, di * 7 + dj))

    def kernel(x_ref, dww_ref, dwb_ref, o_ref):
        x = x_ref[0]                                   # (HWpad, C) f32
        acc = x * dww_ref[24]                          # centre tap (shift 0)
        for sh, t in taps:
            if t == 24:
                continue
            acc = acc + pltpu.roll(x, sh, 0) * dww_ref[t]
        o_ref[0] = acc + dwb_ref[...]

    return kernel


def _dwconv(x_flat, dw_w, dw_b, Wp):
    N, HWpad, C = x_flat.shape
    kernel = _make_dwconv_kernel(Wp, HWpad)
    cost = pl.CostEstimate(
        flops=int(2 * 49 * N * HWpad * C), transcendentals=0,
        bytes_accessed=int(8 * N * HWpad * C + 4 * 50 * C))
    return pl.pallas_call(
        kernel,
        out_shape=jax.ShapeDtypeStruct((N, HWpad, C), jnp.float32),
        grid=(N,),
        in_specs=[pl.BlockSpec((1, HWpad, C), lambda n: (n, 0, 0)),
                  pl.BlockSpec(dw_w.shape, lambda n: (0, 0, 0)),
                  pl.BlockSpec(dw_b.shape, lambda n: (0, 0))],
        out_specs=pl.BlockSpec((1, HWpad, C), lambda n: (n, 0, 0)),
        compiler_params=_params(1),
        cost_estimate=cost,
    )(x_flat, dw_w, dw_b)


def _make_mlp_kernel(Wp, H, W, TM):
    """LayerNorm + Linear(4x) + GELU + Linear + layer_scale + residual on a
    row tile of the padded flat layout; pad rows are re-zeroed on output so
    the next block's zero-padded conv layout stays valid."""

    def kernel(y_ref, x_ref, g_ref, bt_ref, w1_ref, b1_ref, w2_ref, b2_ref,
               ls_ref, o_ref):
        y = _ln(y_ref[0], g_ref[...], bt_ref[...])
        h = jnp.dot(y.astype(jnp.bfloat16), w1_ref[...],
                    preferred_element_type=jnp.float32) + b1_ref[...]
        h = _gelu(h)
        out = jnp.dot(h.astype(jnp.bfloat16), w2_ref[...],
                      preferred_element_type=jnp.float32) + b2_ref[...]
        out = ls_ref[...] * out + x_ref[0]
        # Validity of each flat row, derived in-kernel from an iota (no mask DMA).
        p = pl.program_id(1) * TM + jax.lax.broadcasted_iota(jnp.int32, (TM, 1), 0)
        hp = p // Wp
        wp = p - hp * Wp
        valid = (hp >= 3) & (hp < 3 + H) & (wp >= 3) & (wp < 3 + W)
        o_ref[0] = jnp.where(valid, out, 0.0)

    return kernel


def _mlp_residual(conv_out, x_flat, bp, Wp, H, W, *, target_rows=512):
    N, HWpad, C = x_flat.shape
    TM = _pick_tile(HWpad, target_rows)
    grid = (N, HWpad // TM)
    kernel = _make_mlp_kernel(Wp, H, W, TM)
    consts = [bp["ln_g"], bp["ln_b"], bp["w1"], bp["b1"], bp["w2"], bp["b2"], bp["ls"]]
    in_specs = [pl.BlockSpec((1, TM, C), lambda n, t: (n, t, 0)),
                pl.BlockSpec((1, TM, C), lambda n, t: (n, t, 0))]
    for c in consts:
        in_specs.append(
            pl.BlockSpec(c.shape, (lambda nd: (lambda n, t: (0,) * nd))(c.ndim)))
    M = N * HWpad
    cost = pl.CostEstimate(
        flops=int(4 * M * C * 4 * C + 20 * M * C),
        transcendentals=int(M * 4 * C),
        bytes_accessed=int(12 * M * C + 4 * C * 4 * C))
    return pl.pallas_call(
        kernel,
        out_shape=jax.ShapeDtypeStruct((N, HWpad, C), jnp.float32),
        grid=grid,
        in_specs=in_specs,
        out_specs=pl.BlockSpec((1, TM, C), lambda n, t: (n, t, 0)),
        compiler_params=_params(2),
        cost_estimate=cost,
    )(conv_out, x_flat, *consts)


def cnblock_padded(x_flat, bp, Wp, H, W):
    """One CNBlock on the zero-padded flat layout. StochasticDepth(p=0) == id."""
    conv = _dwconv(x_flat, bp["dw_w"], bp["dw_b"], Wp)
    return _mlp_residual(conv, x_flat, bp, Wp, H, W)


# ----------------------------------------------------------------------------
# Plain-JAX glue (layout only)
# ----------------------------------------------------------------------------
def extract_patches(x_nhwc, k):
    # Non-overlapping k x k patches -> [N*(H/k)*(W/k), k*k*C], order (kh, kw, c).
    N, H, W, C = x_nhwc.shape
    x = x_nhwc.reshape(N, H // k, k, W // k, k, C)
    x = x.transpose(0, 1, 3, 2, 4, 5)
    return x.reshape(N * (H // k) * (W // k), k * k * C)


def _to_padded_flat(x_nhwc):
    # (N,H,W,C) -> (N, HWpad, C): 3-pixel zero border, flat rows padded to 8.
    N, H, W, C = x_nhwc.shape
    Hp, Wp = H + 6, W + 6
    xp = jnp.pad(x_nhwc, ((0, 0), (3, 3), (3, 3), (0, 0)))
    HWpad = _round_up(Hp * Wp, 8)
    xf = xp.reshape(N, Hp * Wp, C)
    if HWpad != Hp * Wp:
        xf = jnp.pad(xf, ((0, 0), (0, HWpad - Hp * Wp), (0, 0)))
    return xf, Wp


def _from_padded_flat(x_flat, H, W):
    N, _, C = x_flat.shape
    Hp, Wp = H + 6, W + 6
    x = x_flat[:, :Hp * Wp, :].reshape(N, Hp, Wp, C)
    return x[:, 3:3 + H, 3:3 + W, :]


# ----------------------------------------------------------------------------
# Parameters & forward
# ----------------------------------------------------------------------------
def init_convnext_params(key, block_setting, num_classes, layer_scale=1e-6):
    # trunc_normal_(std=0.02, a=-2, b=2) truncates at +/-100 sigma -> plain normal.
    keys = iter(jax.random.split(key, 256))

    def tn(shape, dtype=jnp.bfloat16):
        return (jax.random.normal(next(keys), shape, jnp.float32) * 0.02).astype(dtype)

    c0 = block_setting[0][0]
    params = {
        "stem": {"w": tn((4 * 4 * 3, c0)), "b": jnp.zeros((1, c0), jnp.float32),
                 "ln_g": jnp.ones((1, c0), jnp.float32),
                 "ln_b": jnp.zeros((1, c0), jnp.float32)},
        "stages": [], "downsamples": [],
    }
    for (cin, cout, nlayers) in block_setting:
        blocks = []
        for _ in range(nlayers):
            blocks.append({
                "dw_w": tn((49, 1, cin), jnp.float32),
                "dw_b": jnp.zeros((1, cin), jnp.float32),
                "ln_g": jnp.ones((1, cin), jnp.float32),
                "ln_b": jnp.zeros((1, cin), jnp.float32),
                "w1": tn((cin, 4 * cin)), "b1": jnp.zeros((1, 4 * cin), jnp.float32),
                "w2": tn((4 * cin, cin)), "b2": jnp.zeros((1, cin), jnp.float32),
                "ls": jnp.full((1, cin), layer_scale, jnp.float32),
            })
        params["stages"].append(blocks)
        if cout is not None:
            params["downsamples"].append({
                "ln_g": jnp.ones((1, cin), jnp.float32),
                "ln_b": jnp.zeros((1, cin), jnp.float32),
                "w": tn((2 * 2 * cin, cout)),
                "b": jnp.zeros((1, cout), jnp.float32)})
        else:
            params["downsamples"].append(None)

    c_last = block_setting[-1][1] if block_setting[-1][1] is not None else block_setting[-1][0]
    npad = max(128, _round_up(num_classes, 128))       # lane-dense classifier output
    head_w = jnp.zeros((c_last, npad), jnp.float32)
    head_w = head_w.at[:, :num_classes].set(
        jax.random.normal(next(keys), (c_last, num_classes), jnp.float32) * 0.02)
    params["head"] = {"ln_g": jnp.ones((1, c_last), jnp.float32),
                      "ln_b": jnp.zeros((1, c_last), jnp.float32),
                      "w": head_w.astype(jnp.bfloat16),
                      "b": jnp.zeros((1, npad), jnp.float32)}
    return params


def convnext_forward(params, x_nchw, num_classes):
    x = jnp.transpose(x_nchw, (0, 2, 3, 1)).astype(jnp.float32)   # NCHW -> NHWC
    N, H, W, _ = x.shape

    # Stem: Conv2d(3, C0, k=4, s=4) + LayerNorm2d, one fused matmul+LN kernel.
    # TODO(synk): fold the 4x4 patch gather into the matmul index_map.
    p = params["stem"]
    y = matmul_bias_ln(extract_patches(x, 4), p["w"], p["b"], p["ln_g"], p["ln_b"])
    H, W = H // 4, W // 4
    x = y.reshape(N, H, W, -1)

    for blocks, ds in zip(params["stages"], params["downsamples"]):
        # One zero-padded flat layout per stage; blocks keep pad rows zero.
        xf, Wp = _to_padded_flat(x)
        for bp in blocks:
            xf = cnblock_padded(xf, bp, Wp, H, W)
        x = _from_padded_flat(xf, H, W)
        if ds is not None:
            # Downsample: LayerNorm2d + Conv2d(k=2, s=2).  LN is fused into the
            # patch matmul (per-segment LN == LN before the gather).
            # TODO(synk): fold the 2x2 patch gather into the kernel as well.
            y = ds_ln_matmul(extract_patches(x, 2), ds["ln_g"], ds["ln_b"],
                             ds["w"], ds["b"])
            H, W = H // 2, W // 2
            x = y.reshape(N, H, W, -1)

    # AdaptiveAvgPool2d(1) over valid pixels only (plain-JAX glue).
    feat = jnp.mean(x, axis=(1, 2))

    # Classifier: LayerNorm2d + Flatten + Linear (lane-dense, sliced outside).
    hd = params["head"]
    logits = ln_matmul_bias(feat, hd["ln_g"], hd["ln_b"], hd["w"], hd["b"])
    return logits[:, :num_classes]


# ----------------------------------------------------------------------------
# Pure-JAX reference (same bf16 matmul operands) for correctness checks.
# ----------------------------------------------------------------------------
def _ref_ln(x2d, g, b):
    mu = jnp.mean(x2d, axis=-1, keepdims=True)
    var = jnp.mean(jnp.square(x2d - mu), axis=-1, keepdims=True)
    return (x2d - mu) * jax.lax.rsqrt(var + EPS) * g + b


def _ref_mm(x2d, w_bf16, b):
    return jnp.dot(x2d.astype(jnp.bfloat16), w_bf16,
                   preferred_element_type=jnp.float32) + b


def _ref_cnblock(x_nhwc, bp):
    N, H, W, C = x_nhwc.shape
    xpad = jnp.pad(x_nhwc, ((0, 0), (3, 3), (3, 3), (0, 0)))
    acc = jnp.zeros_like(x_nhwc)
    wdw = bp["dw_w"].reshape(49, C)
    for di in range(7):
        for dj in range(7):
            acc = acc + xpad[:, di:di + H, dj:dj + W, :] * wdw[di * 7 + dj]
    conv = acc + bp["dw_b"].reshape(C)
    y = _ref_ln(conv.reshape(-1, C), bp["ln_g"], bp["ln_b"])
    h = jax.nn.gelu(_ref_mm(y, bp["w1"], bp["b1"]), approximate=False)
    out = _ref_mm(h, bp["w2"], bp["b2"])
    return (bp["ls"] * out + x_nhwc.reshape(-1, C)).reshape(N, H, W, C)


def convnext_reference(params, x_nchw, num_classes):
    x = jnp.transpose(x_nchw, (0, 2, 3, 1)).astype(jnp.float32)
    N, H, W, _ = x.shape
    p = params["stem"]
    y = _ref_ln(_ref_mm(extract_patches(x, 4), p["w"], p["b"]), p["ln_g"], p["ln_b"])
    H, W = H // 4, W // 4
    x = y.reshape(N, H, W, -1)
    for blocks, ds in zip(params["stages"], params["downsamples"]):
        for bp in blocks:
            x = _ref_cnblock(x, bp)
        if ds is not None:
            Nc, Hc, Wc, Cc = x.shape
            xf = _ref_ln(x.reshape(-1, Cc), ds["ln_g"], ds["ln_b"]).reshape(Nc, Hc, Wc, Cc)
            y = _ref_mm(extract_patches(xf, 2), ds["w"], ds["b"])
            H, W = Hc // 2, Wc // 2
            x = y.reshape(Nc, H, W, -1)
    feat = jnp.mean(x, axis=(1, 2))
    hd = params["head"]
    logits = _ref_mm(_ref_ln(feat, hd["ln_g"], hd["ln_b"]), hd["w"], hd["b"])
    return logits[:, :num_classes]


if __name__ == "__main__":
    key = jax.random.PRNGKey(0)
    kp, kb, kx = jax.random.split(key, 3)

    # --- end-to-end ConvNeXt (PyTorch-default layer_scale) -------------------
    block_setting = [(16, 32, 1), (32, None, 1)]   # (cin, cout, num_layers)
    num_classes = 10
    params = init_convnext_params(kp, block_setting, num_classes)
    x = jax.random.normal(kx, (2, 3, 16, 16), jnp.float32)        # NCHW input
    out = jax.block_until_ready(convnext_forward(params, x, num_classes))
    assert out.shape == (2, num_classes)
    assert bool(jnp.all(jnp.isfinite(out)))
    ref = jax.block_until_ready(convnext_reference(params, x, num_classes))
    err = float(jnp.max(jnp.abs(out - ref)))
    assert err < 2e-2, f"end-to-end mismatch: max abs err {err}"

    # --- standalone CNBlock with O(1) weights & layer_scale=1 ----------------
    # (actually exercises the conv / MLP path that layer_scale=1e-6 damps out)
    C, Hb, Wb = 16, 6, 5
    ks = jax.random.split(kb, 8)
    bp = {
        "dw_w": jax.random.normal(ks[0], (49, 1, C), jnp.float32) * 0.5,
        "dw_b": jax.random.normal(ks[1], (1, C), jnp.float32) * 0.5,
        "ln_g": 1.0 + 0.1 * jax.random.normal(ks[2], (1, C), jnp.float32),
        "ln_b": 0.1 * jax.random.normal(ks[3], (1, C), jnp.float32),
        "w1": (jax.random.normal(ks[4], (C, 4 * C), jnp.float32) * 0.5).astype(jnp.bfloat16),
        "b1": jax.random.normal(ks[5], (1, 4 * C), jnp.float32) * 0.5,
        "w2": (jax.random.normal(ks[6], (4 * C, C), jnp.float32) * 0.5).astype(jnp.bfloat16),
        "b2": jax.random.normal(ks[7], (1, C), jnp.float32) * 0.5,
        "ls": jnp.full((1, C), 1.0, jnp.float32),
    }
    xb = jax.random.normal(kx, (2, Hb, Wb, C), jnp.float32)
    xf, Wp = _to_padded_flat(xb)
    got = _from_padded_flat(cnblock_padded(xf, bp, Wp, Hb, Wb), Hb, Wb)
    want = _ref_cnblock(xb, bp)
    got, want = jax.block_until_ready((got, want))
    blk_err = float(jnp.max(jnp.abs(got - want))) / (1e-3 + float(jnp.max(jnp.abs(want))))
    assert blk_err < 3e-2, f"CNBlock mismatch: rel err {blk_err}"

    print("KERNEL_OK")
</pallas_src>

<mosaic_0001>
module attributes {stable_mosaic.version = 11 : i64} {
  func.func @_matmul_ln_kernel(%arg0: i32, %arg1: memref<32x48xf32, #tpu.memory_space<vmem>>, %arg2: memref<48x16xbf16, #tpu.memory_space<vmem>>, %arg3: memref<1x16xf32, #tpu.memory_space<vmem>>, %arg4: memref<1x16xf32, #tpu.memory_space<vmem>>, %arg5: memref<1x16xf32, #tpu.memory_space<vmem>>, %arg6: memref<32x16xf32, #tpu.memory_space<vmem>>) attributes {dimension_semantics = [#tpu.dimension_semantics<parallel>], iteration_bounds = array<i64: 1>, scalar_prefetch = 0 : i64, scratch_operands = 0 : i64, tpu.core_type = #tpu.core_type<tc>, window_params = [{transform_indices = @transform_0, window_bounds = array<i64: 32, 48>}, {pipeline_mode = #tpu.pipeline_mode<synchronous>, transform_indices = @transform_1, window_bounds = array<i64: 48, 16>}, {pipeline_mode = #tpu.pipeline_mode<synchronous>, transform_indices = @transform_2, window_bounds = array<i64: 1, 16>}, {pipeline_mode = #tpu.pipeline_mode<synchronous>, transform_indices = @transform_3, window_bounds = array<i64: 1, 16>}, {pipeline_mode = #tpu.pipeline_mode<synchronous>, transform_indices = @transform_4, window_bounds = array<i64: 1, 16>}, {transform_indices = @transform_5, window_bounds = array<i64: 32, 16>}]} {
    %c0 = arith.constant 0 : index
    %c0_0 = arith.constant 0 : index
    %0 = vector.load %arg1[%c0, %c0_0] : memref<32x48xf32, #tpu.memory_space<vmem>>, vector<32x48xf32>
    %1 = arith.truncf %0 : vector<32x48xf32> to vector<32x48xbf16>
    %c0_1 = arith.constant 0 : index
    %c0_2 = arith.constant 0 : index
    %2 = vector.load %arg2[%c0_1, %c0_2] : memref<48x16xbf16, #tpu.memory_space<vmem>>, vector<48x16xbf16>
    %cst = arith.constant dense<0.000000e+00> : vector<32x16xf32>
    %3 = tpu.matmul %1, %2, %cst {dimension_numbers = #tpu.dot_dimension_numbers<[1], [0], [0], [1], [0, 0, 1, 1], [], []>} : vector<32x48xbf16>, vector<48x16xbf16>, vector<32x16xf32> -> vector<32x16xf32>
    %c0_3 = arith.constant 0 : index
    %c0_4 = arith.constant 0 : index
    %4 = vector.load %arg3[%c0_3, %c0_4] : memref<1x16xf32, #tpu.memory_space<vmem>>, vector<1x16xf32>
    %5 = vector.broadcast %4 : vector<1x16xf32> to vector<32x16xf32>
    %6 = arith.addf %3, %5 : vector<32x16xf32>
    %c0_5 = arith.constant 0 : index
    %c0_6 = arith.constant 0 : index
    %7 = vector.load %arg4[%c0_5, %c0_6] : memref<1x16xf32, #tpu.memory_space<vmem>>, vector<1x16xf32>
    %c0_7 = arith.constant 0 : index
    %c0_8 = arith.constant 0 : index
    %8 = vector.load %arg5[%c0_7, %c0_8] : memref<1x16xf32, #tpu.memory_space<vmem>>, vector<1x16xf32>
    %cst_9 = arith.constant dense<0.000000e+00> : vector<32xf32>
    %9 = vector.multi_reduction <add>, %6, %cst_9 [1] : vector<32x16xf32> to vector<32xf32>
    %10 = vector.shape_cast %9 : vector<32xf32> to vector<32x1xf32>
    %cst_10 = arith.constant 1.600000e+01 : f32
    %11 = vector.broadcast %cst_10 : f32 to vector<32x1xf32>
    %12 = arith.divf %10, %11 : vector<32x1xf32>
    %13 = vector.broadcast %12 : vector<32x1xf32> to vector<32x16xf32>
    %14 = arith.subf %6, %13 : vector<32x16xf32>
    %15 = arith.mulf %14, %14 : vector<32x16xf32>
    %cst_11 = arith.constant dense<0.000000e+00> : vector<32xf32>
    %16 = vector.multi_reduction <add>, %15, %cst_11 [1] : vector<32x16xf32> to vector<32xf32>
    %17 = vector.shape_cast %16 : vector<32xf32> to vector<32x1xf32>
    %cst_12 = arith.constant 1.600000e+01 : f32
    %18 = vector.broadcast %cst_12 : f32 to vector<32x1xf32>
    %19 = arith.divf %17, %18 : vector<32x1xf32>
    %20 = vector.broadcast %12 : vector<32x1xf32> to vector<32x16xf32>
    %21 = arith.subf %6, %20 : vector<32x16xf32>
    %cst_13 = arith.constant 9.99999997E-7 : f32
    %22 = vector.broadcast %cst_13 : f32 to vector<32x1xf32>
    %23 = arith.addf %19, %22 : vector<32x1xf32>
    %24 = math.rsqrt %23 : vector<32x1xf32>
    %25 = vector.broadcast %24 : vector<32x1xf32> to vector<32x16xf32>
    %26 = arith.mulf %21, %25 : vector<32x16xf32>
    %27 = vector.broadcast %7 : vector<1x16xf32> to vector<32x16xf32>
    %28 = arith.mulf %26, %27 : vector<32x16xf32>
    %29 = vector.broadcast %8 : vector<1x16xf32> to vector<32x16xf32>
    %30 = arith.addf %28, %29 : vector<32x16xf32>
    %c0_14 = arith.constant 0 : index
    %c0_15 = arith.constant 0 : index
    %31 = vector.load %arg6[%c0_14, %c0_15] : memref<32x16xf32, #tpu.memory_space<vmem>>, vector<32x16xf32>
    tpu.vector_store %arg6[%c0_14, %c0_15], %30 {strides = array<i32>} : memref<32x16xf32, #tpu.memory_space<vmem>>, vector<32x16xf32>,
    return
  }
  func.func @transform_0(%arg0: i32) -> (i32, i32) {
    %c0_i32 = arith.constant 0 : i32
    %c0_i32_0 = arith.constant 0 : i32
    return %arg0, %c0_i32 : i32, i32
  }
  func.func @transform_1(%arg0: i32) -> (i32, i32) {
    %c0_i32 = arith.constant 0 : i32
    %c0_i32_0 = arith.constant 0 : i32
    %c0_i32_1 = arith.constant 0 : i32
    return %c0_i32, %c0_i32_0 : i32, i32
  }
  func.func @transform_2(%arg0: i32) -> (i32, i32) {
    %c0_i32 = arith.constant 0 : i32
    %c0_i32_0 = arith.constant 0 : i32
    %c0_i32_1 = arith.constant 0 : i32
    return %c0_i32, %c0_i32_0 : i32, i32
  }
  func.func @transform_3(%arg0: i32) -> (i32, i32) {
    %c0_i32 = arith.constant 0 : i32
    %c0_i32_0 = arith.constant 0 : i32
    %c0_i32_1 = arith.constant 0 : i32
    return %c0_i32, %c0_i32_0 : i32, i32
  }
  func.func @transform_4(%arg0: i32) -> (i32, i32) {
    %c0_i32 = arith.constant 0 : i32
    %c0_i32_0 = arith.constant 0 : i32
    %c0_i32_1 = arith.constant 0 : i32
    return %c0_i32, %c0_i32_0 : i32, i32
  }
  func.func @transform_5(%arg0: i32) -> (i32, i32) {
    %c0_i32 = arith.constant 0 : i32
    %c0_i32_0 = arith.constant 0 : i32
    return %arg0, %c0_i32 : i32, i32
  }
}

</mosaic_0001>

<llo_original>
// kernel: tpu_custom_call.1
$region0: #{tpu_custom_call.1}
  #allocation0 [shape = 'u32[]', space=smem, size = 0x4, offset = 0x4, fixed_abs, tag = 'smem constant byte address 0x4 - core index']
  #allocation1 [shape = 'u32[144,128]{1,0:T(1,128)}', space=vmem, size = 0x12000, scoped, tag = 'internal scratch']
  %s0 = inlined_call_operand.vmem [shape: f32[32,48], index: 0, kind: input, shape index: {}]
  %s1 = inlined_call_operand.vmem [shape: bf16[48,16], index: 1, kind: input, shape index: {}]
  %s2 = inlined_call_operand.vmem [shape: f32[1,16], index: 2, kind: input, shape index: {}]
  %s3 = inlined_call_operand.vmem [shape: f32[1,16], index: 3, kind: input, shape index: {}]
  %s4 = inlined_call_operand.vmem [shape: f32[1,16], index: 4, kind: input, shape index: {}]
  %s5 = inlined_call_operand.vmem [shape: f32[32,16], index: 5, kind: output, shape index: {}]
  %s6 = sld [smem:[#allocation0]]
  $region30: #{tpu_custom_call.1} parent=0
    _
  %s8 = ssub.s32 1, %s6
  %s9 = scalar_select 0, %s8, %s6
  // Predicated region
  $region2: #{tpu_custom_call.1} parent=0 // pred_check
    _
  $region3: #{tpu_custom_call.1} parent=0 // pred_check_branch
    %11 = sbr.rel (0) target = $region5
  $region4: #{tpu_custom_call.1} parent=0 // pred_region
    _
  $region5: #{tpu_custom_call.1} parent=0 // pred_fallthru
    _
  // Predicated region
  $region6: #{tpu_custom_call.1} parent=0 // pred_check
    _
  $region7: #{tpu_custom_call.1} parent=0 // pred_check_branch
    %13 = sbr.rel (0) target = $region9
  $region8: #{tpu_custom_call.1} parent=0 // pred_region
    _
  $region9: #{tpu_custom_call.1} parent=0 // pred_fallthru
    _
  // Predicated region
  $region10: #{tpu_custom_call.1} parent=0 // pred_check
    _
  $region11: #{tpu_custom_call.1} parent=0 // pred_check_branch
    %15 = sbr.rel (0) target = $region13
  $region12: #{tpu_custom_call.1} parent=0 // pred_region
    _
  $region13: #{tpu_custom_call.1} parent=0 // pred_fallthru
    _
  // Predicated region
  $region14: #{tpu_custom_call.1} parent=0 // pred_check
    _
  $region15: #{tpu_custom_call.1} parent=0 // pred_check_branch
    %17 = sbr.rel (0) target = $region17
  $region16: #{tpu_custom_call.1} parent=0 // pred_region
    _
  $region17: #{tpu_custom_call.1} parent=0 // pred_fallthru
    _
  // Predicated region
  $region18: #{tpu_custom_call.1} parent=0 // pred_check
    _
  $region19: #{tpu_custom_call.1} parent=0 // pred_check_branch
    %19 = sbr.rel (0) target = $region21
  $region20: #{tpu_custom_call.1} parent=0 // pred_region
    _
  $region21: #{tpu_custom_call.1} parent=0 // pred_fallthru
    _
  %v21 = vld [vmem:[%s0] sm:$0xff]
  %v22 = vld [vmem:[%s0 + $0x8] sm:$0xff]
  %v23 = vld [vmem:[%s0 + $0x10] sm:$0xff]
  %v24 = vld [vmem:[%s0 + $0x18] sm:$0xff]
  %v25 = vpack.c.bf16 %v22, %v21
  %v26 = vpack.c.bf16 %v24, %v23
  %v27 = vld [vmem:[%s1] sm:$0xf]
  %v28 = vld [vmem:[%s1 + $0x4] sm:$0xf]
  %v29 = vld [vmem:[%s1 + $0x8] sm:$0xf]
  %v30 = vld [vmem:[%s1 + $0xc] sm:$0xf]
  %v31 = vld [vmem:[%s1 + $0x10] sm:$0xf]
  %v32 = vld [vmem:[%s1 + $0x14] sm:$0xf]
  %v33 = vld [vmem:[%s2] sm:$0x1]
  %v35 = vlaneseq
  %v36 = vshrl.u32 %v35, 7
  %v37 = vsub.s32 0, %v36
  %v38 = vrot.slane %v33, %v37
  %v46 = vunpack.c.l.b16 %v27
  %v47 = vunpack.c.l.b16 %v28
  %v48 = vunpack.c.l.b16 %v29
  %v49 = vunpack.c.l.b16 %v30
  %v50 = vunpack.c.l.b16 %v31
  %v51 = vunpack.c.l.b16 %v32
  %v52 = vpack.c.b16 %v47, %v46
  %v53 = vpack.c.b16 %v49, %v48
  %v54 = vpack.c.b16 %v51, %v50
  %vm58 = vcmask 392192
  %v60 = vsel %vm58, %v25, 0
  %v63 = vsel %vm58, %v26, 0
  %65 = vmatprep.subr.bf16.mxu0 0
  %66 = vmatpush1.bf16.msra.mxu0 0
  %67 = vmatprep.subr.bf16.mxu0 0
  %68 = vmatpush1.bf16.msra.mxu0 0
  %69 = vmatprep.subr.bf16.mxu0 0
  %70 = vmatpush1.bf16.msra.mxu0 0
  %71 = vmatprep.subr.bf16.mxu0 0
  %72 = vmatpush1.bf16.msra.mxu0 0
  %73 = vmatprep.subr.bf16.mxu0 0
  %74 = vmatpush1.bf16.msra.mxu0 0
  %75 = vmatprep.subr.bf16.mxu0 0
  %76 = vmatpush1.bf16.msra.mxu0 %v54
  %77 = vmatprep.subr.bf16.mxu0 0
  %78 = vmatpush1.bf16.msra.mxu0 %v53
  %79 = vmatprep.subr.bf16.mxu0 0
  %80 = vmatpush1.bf16.msra.mxu0 %v52
  %81 = vmatprep.subr.bf16.mxu0 0
  %82 = vmatpush2.bf16.msra.mxu0 0
  %83 = vmatprep.subr.bf16.mxu0 0
  %84 = vmatpush2.bf16.msra.mxu0 0
  %85 = vmatprep.subr.bf16.mxu0 0
  %86 = vmatpush2.bf16.msra.mxu0 0
  %87 = vmatprep.subr.bf16.mxu0 0
  %88 = vmatpush2.bf16.msra.mxu0 0
  %89 = vmatprep.subr.bf16.mxu0 0
  %90 = vmatpush2.bf16.msra.mxu0 0
  %91 = vmatprep.subr.bf16.mxu0 0
  %92 = vmatpush2.bf16.msra.mxu0 0
  %93 = vmatprep.subr.bf16.mxu0 0
  %94 = vmatpush2.bf16.msra.mxu0 0
  %95 = vmatprep.subr.bf16.mxu0 0
  %96 = vmatpush2.bf16.msra.mxu0 0
  %97 = vmatprep.mubr.bf16.mxu0 0
  %98 = vmatmul.mubr.bf16.gmra.mxu0 %v60
  %v99 = vpop.f32.mrf.mxu0
  %v100 = vadd.f32 %v38, %v99
  %v101 = vpop.f32.mrf.mxu0
  %v102 = vpop.f32.mrf.mxu0
  %v103 = vadd.f32 %v38, %v102
  %v104 = vpop.f32.mrf.mxu0
  %105 = vmatprep.mubr.bf16.mxu0 0
  %106 = vmatmul.mubr.bf16.gmra.mxu0 %v63
  %v107 = vpop.f32.mrf.mxu0
  %v108 = vadd.f32 %v38, %v107
  %v109 = vpop.f32.mrf.mxu0
  %v110 = vpop.f32.mrf.mxu0
  %v111 = vadd.f32 %v38, %v110
  %v112 = vpop.f32.mrf.mxu0
  %113 = vdwg.mxu0
  %v114 = vld [vmem:[%s3] sm:$0x1]
  %v115 = vld [vmem:[%s4] sm:$0x1]
  %vm116 = vcmask 130048
  %v117 = vsel %vm116, %v100, 0.0
  %118 = vadd.xlane.f32.xlu0 %v117
  %v119 = vpop.xlane.xlu0 %118
  %v120 = vsel %vm116, %v103, 0.0
  %121 = vadd.xlane.f32.xlu0 %v120
  %v122 = vpop.xlane.xlu0 %121
  %v123 = vsel %vm116, %v108, 0.0
  %124 = vadd.xlane.f32.xlu0 %v123
  %v125 = vpop.xlane.xlu0 %124
  %v126 = vsel %vm116, %v111, 0.0
  %127 = vadd.xlane.f32.xlu0 %v126
  %v128 = vpop.xlane.xlu0 %127
  %v129 = vrcp.pop 16.0
  %v130 = vmul.f32 %v119, %v129
  %v131 = vmul.f32 %v122, %v129
  %v132 = vmul.f32 %v125, %v129
  %v133 = vmul.f32 %v128, %v129
  %v134 = vsub.f32 %v100, %v130
  %v135 = vsub.f32 %v103, %v131
  %v136 = vsub.f32 %v108, %v132
  %v137 = vsub.f32 %v111, %v133
  %v138 = vmul.f32 %v134, %v134
  %v139 = vmul.f32 %v135, %v135
  %v140 = vmul.f32 %v136, %v136
  %v141 = vmul.f32 %v137, %v137
  %v142 = vsel %vm116, %v138, 0.0
  %143 = vadd.xlane.f32.xlu0 %v142
  %v144 = vpop.xlane.xlu0 %143
  %v145 = vsel %vm116, %v139, 0.0
  %146 = vadd.xlane.f32.xlu0 %v145
  %v147 = vpop.xlane.xlu0 %146
  %v148 = vsel %vm116, %v140, 0.0
  %149 = vadd.xlane.f32.xlu0 %v148
  %v150 = vpop.xlane.xlu0 %149
  %v151 = vsel %vm116, %v141, 0.0
  %152 = vadd.xlane.f32.xlu0 %v151
  %v153 = vpop.xlane.xlu0 %152
  %v154 = vmul.f32 %v144, %v129
  %v155 = vmul.f32 %v147, %v129
  %v156 = vmul.f32 %v150, %v129
  %v157 = vmul.f32 %v153, %v129
  %v158 = vadd.f32 %v154, 1e-06
  %v159 = vadd.f32 %v155, 1e-06
  %v160 = vadd.f32 %v156, 1e-06
  %v161 = vadd.f32 %v157, 1e-06
  %v162 = vrsqrt.pop %v158
  %v163 = vrsqrt.pop %v159
  %v164 = vrsqrt.pop %v160
  %v165 = vrsqrt.pop %v161
  %v166 = vmul.f32 %v134, %v162
  %v167 = vmul.f32 %v135, %v163
  %v168 = vmul.f32 %v136, %v164
  %v169 = vmul.f32 %v137, %v165
  %v171 = vlaneseq
  %v172 = vshrl.u32 %v171, 7
  %v173 = vsub.s32 0, %v172
  %v174 = vrot.slane %v114, %v173
  %v176 = vmul.f32 %v166, %v174
  %v177 = vmul.f32 %v167, %v174
  %v178 = vmul.f32 %v168, %v174
  %v179 = vmul.f32 %v169, %v174
  %v181 = vlaneseq
  %v182 = vshrl.u32 %v181, 7
  %v183 = vsub.s32 0, %v182
  %v184 = vrot.slane %v115, %v183
  %v186 = vadd.f32 %v176, %v184
  %v187 = vadd.f32 %v177, %v184
  %v188 = vadd.f32 %v178, %v184
  %v189 = vadd.f32 %v179, %v184
  %190 = vst.msk [vmem:[%s5] sm:$0xff] %vm116, %v186
  %191 = vst.msk [vmem:[%s5 + $0x8] sm:$0xff] %vm116, %v187
  %192 = vst.msk [vmem:[%s5 + $0x10] sm:$0xff] %vm116, %v188
  %193 = vst.msk [vmem:[%s5 + $0x18] sm:$0xff] %vm116, %v189
  // Predicated region
  $region22: #{tpu_custom_call.1} parent=0 // pred_check
    _
  $region23: #{tpu_custom_call.1} parent=0 // pred_check_branch
    %195 = sbr.rel (0) target = $region25
  $region24: #{tpu_custom_call.1} parent=0 // pred_region
    _
  $region25: #{tpu_custom_call.1} parent=0 // pred_fallthru
    _
  // Predicated region
  $region26: #{tpu_custom_call.1} parent=0 // pred_check
    _
  $region27: #{tpu_custom_call.1} parent=0 // pred_check_branch
    %197 = sbr.rel (0) target = $region29
  $region28: #{tpu_custom_call.1} parent=0 // pred_region
    _
  $region29: #{tpu_custom_call.1} parent=0 // pred_fallthru
    _

</llo_original>
